<compile_context>
chip_gen: v6e
topology: v6e:2x2x1
jax: 0.10.0
libtpu: 0.0.40
codegen_flags: <defaults>
</compile_context>

<pallas_src>
import functools
import math

import jax
import jax.numpy as jnp
from jax import lax
from jax.experimental import pallas as pl
from jax.experimental.pallas import tpu as pltpu


# --------------------------------------------------------------------------
# Helpers
# --------------------------------------------------------------------------
def _vmem_limit_bytes() -> int:
    """Generation-aware VMEM budget (v5e/v6e: 128 MiB physical, v7x: 64 MiB)."""
    try:
        cap = int(pltpu.get_tpu_info().vmem_capacity_bytes)
    except Exception:
        cap = 64 * 1024 * 1024
    lim = cap * 3 // 4
    return int(min(max(lim, 32 * 1024 * 1024), 96 * 1024 * 1024))


def _compiler_params(n_axes: int) -> pltpu.CompilerParams:
    return pltpu.CompilerParams(
        dimension_semantics=("parallel",) * n_axes,
        vmem_limit_bytes=_vmem_limit_bytes(),
    )


def _row_tile(m: int, target: int = 512) -> int:
    """Row-tile size: multiple of 8; full (rounded-up) rows when small."""
    if m <= target:
        return ((m + 7) // 8) * 8
    return target


def _pad_rows(x: jnp.ndarray, m_pad: int) -> jnp.ndarray:
    pad = m_pad - x.shape[0]
    if pad:
        x = jnp.pad(x, ((0, pad), (0, 0)))
    return x


# --------------------------------------------------------------------------
# Kernel 1: fused Q/K/V projections (x read once, three lane-dense outputs)
# --------------------------------------------------------------------------
def _qkv_kernel(x_ref, wq_ref, wk_ref, wv_ref, bq_ref, bk_ref, bv_ref,
                q_ref, k_ref, v_ref):
    x = x_ref[...]
    q_ref[...] = (jnp.dot(x, wq_ref[...], preferred_element_type=jnp.float32)
                  + bq_ref[...]).astype(q_ref.dtype)
    k_ref[...] = (jnp.dot(x, wk_ref[...], preferred_element_type=jnp.float32)
                  + bk_ref[...]).astype(k_ref.dtype)
    v_ref[...] = (jnp.dot(x, wv_ref[...], preferred_element_type=jnp.float32)
                  + bv_ref[...]).astype(v_ref.dtype)


def qkv_projection(x, wq, wk, wv, bq, bk, bv, *, tm):
    m_pad, E = x.shape
    row_spec = pl.BlockSpec((tm, E), lambda i: (i, 0))
    w_spec = pl.BlockSpec((E, E), lambda i: (0, 0))
    b_spec = pl.BlockSpec((1, E), lambda i: (0, 0))
    out = jax.ShapeDtypeStruct((m_pad, E), x.dtype)
    return pl.pallas_call(
        _qkv_kernel,
        out_shape=(out, out, out),
        grid=(m_pad // tm,),
        in_specs=[row_spec, w_spec, w_spec, w_spec, b_spec, b_spec, b_spec],
        out_specs=(row_spec, row_spec, row_spec),
        compiler_params=_compiler_params(1),
    )(x, wq, wk, wv, bq, bk, bv)


# --------------------------------------------------------------------------
# Kernel 2: multi-head self-attention, one grid step per batch, all heads
# processed in-kernel, output stored as a lane-dense (S, E) tile.
# --------------------------------------------------------------------------
def _mha_kernel(q_ref, k_ref, v_ref, m_ref, o_ref, *, num_heads, scale):
    # q/k/v/o: (S, E) tiles for one batch; m_ref: (1, S) int32 key mask.
    bias = jnp.where(m_ref[...] == 0, jnp.float32(-1e30), jnp.float32(0.0))  # (1, S)
    dh = q_ref.shape[-1] // num_heads
    # Static unroll over heads; slices are static column windows of width Dh.
    for h in range(num_heads):
        lo = h * dh
        q = q_ref[:, lo:lo + dh].astype(jnp.float32)
        k = k_ref[:, lo:lo + dh].astype(jnp.float32)
        v = v_ref[:, lo:lo + dh].astype(jnp.float32)
        # scores = q @ k^T (contract over Dh, no explicit transpose)
        s = lax.dot_general(q, k, (((1,), (1,)), ((), ())),
                            preferred_element_type=jnp.float32)
        s = s * scale + bias
        s = s - jnp.max(s, axis=-1, keepdims=True)
        p = jnp.exp(s)
        # EUP reciprocal — normalization divide off the VPU slot.
        inv = pl.reciprocal(jnp.sum(p, axis=-1, keepdims=True), approx=True)
        # NOTE: fully-masked rows yield a uniform softmax (matches the JAX ref).
        o = jnp.dot(p * inv, v, preferred_element_type=jnp.float32)
        o_ref[:, lo:lo + dh] = o.astype(o_ref.dtype)


def multi_head_attention(q2d, k2d, v2d, mask, *, B, S, num_heads):
    m_pad, E = q2d.shape
    dh = E // num_heads
    kernel = functools.partial(_mha_kernel, num_heads=num_heads,
                               scale=1.0 / math.sqrt(dh))
    tile = pl.BlockSpec((S, E), lambda b: (b, 0))
    return pl.pallas_call(
        kernel,
        out_shape=jax.ShapeDtypeStruct((m_pad, E), q2d.dtype),
        grid=(B,),
        in_specs=[tile, tile, tile,
                  pl.BlockSpec((None, 1, S), lambda b: (b, 0, 0))],
        out_specs=tile,
        compiler_params=_compiler_params(1),
    )(q2d, k2d, v2d, mask)


# --------------------------------------------------------------------------
# Kernel 3: fused fc_out projection + residual add + LayerNorm1
# --------------------------------------------------------------------------
def _attn_out_ln_kernel(a_ref, res_ref, wo_ref, bo_ref, g_ref, b_ref, o_ref, *, eps):
    y = jnp.dot(a_ref[...], wo_ref[...], preferred_element_type=jnp.float32)
    y = y + bo_ref[...] + res_ref[...].astype(jnp.float32)
    mean = jnp.mean(y, axis=-1, keepdims=True)
    yc = y - mean
    var = jnp.mean(yc * yc, axis=-1, keepdims=True)
    o_ref[...] = (yc * lax.rsqrt(var + eps) * g_ref[...] + b_ref[...]).astype(o_ref.dtype)


def attn_out_residual_layernorm(attn2d, res2d, wo, bo, gamma, beta, *, tm, eps=1e-5):
    m_pad, E = attn2d.shape
    row_spec = pl.BlockSpec((tm, E), lambda i: (i, 0))
    vec_spec = pl.BlockSpec((1, E), lambda i: (0, 0))
    kernel = functools.partial(_attn_out_ln_kernel, eps=eps)
    return pl.pallas_call(
        kernel,
        out_shape=jax.ShapeDtypeStruct((m_pad, E), attn2d.dtype),
        grid=(m_pad // tm,),
        in_specs=[row_spec, row_spec,
                  pl.BlockSpec((E, E), lambda i: (0, 0)),
                  vec_spec, vec_spec, vec_spec],
        out_specs=row_spec,
        compiler_params=_compiler_params(1),
    )(attn2d, res2d, wo, bo, gamma, beta)


# --------------------------------------------------------------------------
# Kernel 4: fused FFN (w1 + ReLU + w2) + residual add + LayerNorm2
# --------------------------------------------------------------------------
def _ffn_ln_kernel(x_ref, w1_ref, b1_ref, w2_ref, b2_ref, g_ref, b_ref, o_ref, *, eps):
    x = x_ref[...].astype(jnp.float32)
    h = jnp.dot(x, w1_ref[...], preferred_element_type=jnp.float32) + b1_ref[...]
    h = jnp.maximum(h, 0.0)                       # ReLU fused, (tm, HIDDEN) stays in VMEM
    ff = jnp.dot(h, w2_ref[...], preferred_element_type=jnp.float32) + b2_ref[...]
    y = x + ff
    mean = jnp.mean(y, axis=-1, keepdims=True)
    yc = y - mean
    var = jnp.mean(yc * yc, axis=-1, keepdims=True)
    o_ref[...] = (yc * lax.rsqrt(var + eps) * g_ref[...] + b_ref[...]).astype(o_ref.dtype)


def ffn_residual_layernorm(x2d, w1, b1, w2, b2, gamma, beta, *, tm, eps=1e-5):
    m_pad, E = x2d.shape
    hidden = w1.shape[1]
    row_spec = pl.BlockSpec((tm, E), lambda i: (i, 0))
    vec_spec = pl.BlockSpec((1, E), lambda i: (0, 0))
    kernel = functools.partial(_ffn_ln_kernel, eps=eps)
    return pl.pallas_call(
        kernel,
        out_shape=jax.ShapeDtypeStruct((m_pad, E), x2d.dtype),
        grid=(m_pad // tm,),
        in_specs=[row_spec,
                  pl.BlockSpec((E, hidden), lambda i: (0, 0)),
                  pl.BlockSpec((1, hidden), lambda i: (0, 0)),
                  pl.BlockSpec((hidden, E), lambda i: (0, 0)),
                  vec_spec, vec_spec, vec_spec],
        out_specs=row_spec,
        compiler_params=_compiler_params(1),
    )(x2d, w1, b1, w2, b2, gamma, beta)


# --------------------------------------------------------------------------
# EncoderLayer forward (eval mode; dropout == identity)
# --------------------------------------------------------------------------
def encoder_layer_forward(src, src_mask, params, num_heads, *, eps=1e-5):
    """src: (B, S, E) f32; src_mask: (B, 1, 1, S), 0 = masked-out key."""
    B, S, E = src.shape
    M = B * S
    tm = _row_tile(M)
    m_pad = ((M + tm - 1) // tm) * tm

    x2d = _pad_rows(src.reshape(M, E), m_pad)
    mask = src_mask.reshape(B, 1, S).astype(jnp.int32)

    # --- Multi-head self-attention (fused QKV, head-sliced attention) ---
    q2d, k2d, v2d = qkv_projection(
        x2d, params["wq"], params["wk"], params["wv"],
        params["bq"], params["bk"], params["bv"], tm=tm)
    attn2d = multi_head_attention(q2d, k2d, v2d, mask, B=B, S=S, num_heads=num_heads)

    # --- fc_out + residual + LayerNorm1 (dropout == identity in eval mode) ---
    h1 = attn_out_residual_layernorm(
        attn2d, x2d, params["wo"], params["bo"],
        params["g1"], params["beta1"], tm=tm, eps=eps)

    # --- FFN + residual + LayerNorm2 ---
    out2d = ffn_residual_layernorm(
        h1, params["w1"], params["b1"], params["w2"], params["b2"],
        params["g2"], params["beta2"], tm=tm, eps=eps)

    return out2d[:M].reshape(B, S, E)


# --------------------------------------------------------------------------
# Pure-JAX reference (same math, no Pallas) for correctness checking
# --------------------------------------------------------------------------
def ref_encoder_layer(src, src_mask, params, num_heads):
    B, S, E = src.shape
    Dh = E // num_heads
    x2d = src.reshape(B * S, E)

    def lin(x, w, b, relu=False):
        y = x @ w + b
        return jnp.maximum(y, 0.0) if relu else y

    def ln(y, g, b, eps=1e-5):
        mean = jnp.mean(y, axis=-1, keepdims=True)
        var = jnp.mean((y - mean) ** 2, axis=-1, keepdims=True)
        return (y - mean) * lax.rsqrt(var + eps) * g + b

    q = lin(x2d, params["wq"], params["bq"]).reshape(B, S, num_heads, Dh).transpose(0, 2, 1, 3)
    k = lin(x2d, params["wk"], params["bk"]).reshape(B, S, num_heads, Dh).transpose(0, 2, 1, 3)
    v = lin(x2d, params["wv"], params["bv"]).reshape(B, S, num_heads, Dh).transpose(0, 2, 1, 3)

    mask_bias = jnp.where(src_mask == 0, jnp.float32(-1e30), jnp.float32(0.0))
    scores = jnp.einsum("bhsd,bhtd->bhst", q, k) / math.sqrt(Dh) + mask_bias
    w = jax.nn.softmax(scores, axis=-1)
    attn = jnp.einsum("bhst,bhtd->bhsd", w, v)
    attn2d = attn.transpose(0, 2, 1, 3).reshape(B * S, E)
    attn_out = lin(attn2d, params["wo"], params["bo"])

    h1 = ln(x2d + attn_out, params["g1"], params["beta1"])
    ff = lin(lin(h1, params["w1"], params["b1"], relu=True), params["w2"], params["b2"])
    h2 = ln(h1 + ff, params["g2"], params["beta2"])
    return h2.reshape(B, S, E)


if __name__ == "__main__":
    # Small shapes consistent with the module.
    B, S, E, H, HIDDEN = 2, 8, 32, 4, 64

    key = jax.random.PRNGKey(0)
    keys = jax.random.split(key, 16)

    def w_init(k, shape, scale=0.1):
        return jax.random.normal(k, shape, dtype=jnp.float32) * scale

    params = {
        "wq": w_init(keys[0], (E, E)), "bq": w_init(keys[1], (1, E)),
        "wk": w_init(keys[2], (E, E)), "bk": w_init(keys[3], (1, E)),
        "wv": w_init(keys[4], (E, E)), "bv": w_init(keys[5], (1, E)),
        "wo": w_init(keys[6], (E, E)), "bo": w_init(keys[7], (1, E)),
        "w1": w_init(keys[8], (E, HIDDEN)), "b1": w_init(keys[9], (1, HIDDEN)),
        "w2": w_init(keys[10], (HIDDEN, E)), "b2": w_init(keys[11], (1, E)),
        "g1": jnp.ones((1, E), jnp.float32), "beta1": jnp.zeros((1, E), jnp.float32),
        "g2": jnp.ones((1, E), jnp.float32), "beta2": jnp.zeros((1, E), jnp.float32),
    }

    src = jax.random.normal(keys[12], (B, S, E), dtype=jnp.float32)
    # Key-padding style mask: mask out the last two key positions of batch 1.
    src_mask = jnp.ones((B, 1, 1, S), dtype=jnp.int32)
    src_mask = src_mask.at[1, :, :, S - 2:].set(0)

    out = encoder_layer_forward(src, src_mask, params, num_heads=H)
    out = jax.block_until_ready(out)
    assert out.shape == (B, S, E), f"bad output shape {out.shape}"

    ref = ref_encoder_layer(src, src_mask, params, num_heads=H)
    # Slightly loose tolerance: softmax denom uses the EUP approx reciprocal.
    assert jnp.allclose(out, ref, atol=2e-3, rtol=2e-3), "mismatch vs pure-JAX reference"
    assert bool(jnp.all(jnp.isfinite(out))), "non-finite values in output"

    print("KERNEL_OK")
</pallas_src>

<mosaic_0001>
module attributes {stable_mosaic.version = 11 : i64} {
  func.func @_qkv_kernel(%arg0: i32, %arg1: memref<16x32xf32, #tpu.memory_space<vmem>>, %arg2: memref<32x32xf32, #tpu.memory_space<vmem>>, %arg3: memref<32x32xf32, #tpu.memory_space<vmem>>, %arg4: memref<32x32xf32, #tpu.memory_space<vmem>>, %arg5: memref<1x32xf32, #tpu.memory_space<vmem>>, %arg6: memref<1x32xf32, #tpu.memory_space<vmem>>, %arg7: memref<1x32xf32, #tpu.memory_space<vmem>>, %arg8: memref<16x32xf32, #tpu.memory_space<vmem>>, %arg9: memref<16x32xf32, #tpu.memory_space<vmem>>, %arg10: memref<16x32xf32, #tpu.memory_space<vmem>>) attributes {dimension_semantics = [#tpu.dimension_semantics<parallel>], iteration_bounds = array<i64: 1>, scalar_prefetch = 0 : i64, scratch_operands = 0 : i64, tpu.core_type = #tpu.core_type<tc>, window_params = [{transform_indices = @transform_0, window_bounds = array<i64: 16, 32>}, {pipeline_mode = #tpu.pipeline_mode<synchronous>, transform_indices = @transform_1, window_bounds = array<i64: 32, 32>}, {pipeline_mode = #tpu.pipeline_mode<synchronous>, transform_indices = @transform_2, window_bounds = array<i64: 32, 32>}, {pipeline_mode = #tpu.pipeline_mode<synchronous>, transform_indices = @transform_3, window_bounds = array<i64: 32, 32>}, {pipeline_mode = #tpu.pipeline_mode<synchronous>, transform_indices = @transform_4, window_bounds = array<i64: 1, 32>}, {pipeline_mode = #tpu.pipeline_mode<synchronous>, transform_indices = @transform_5, window_bounds = array<i64: 1, 32>}, {pipeline_mode = #tpu.pipeline_mode<synchronous>, transform_indices = @transform_6, window_bounds = array<i64: 1, 32>}, {transform_indices = @transform_7, window_bounds = array<i64: 16, 32>}, {transform_indices = @transform_8, window_bounds = array<i64: 16, 32>}, {transform_indices = @transform_9, window_bounds = array<i64: 16, 32>}]} {
    %c0 = arith.constant 0 : index
    %c0_0 = arith.constant 0 : index
    %0 = vector.load %arg1[%c0, %c0_0] : memref<16x32xf32, #tpu.memory_space<vmem>>, vector<16x32xf32>
    %c0_1 = arith.constant 0 : index
    %c0_2 = arith.constant 0 : index
    %1 = vector.load %arg2[%c0_1, %c0_2] : memref<32x32xf32, #tpu.memory_space<vmem>>, vector<32x32xf32>
    %cst = arith.constant dense<0.000000e+00> : vector<16x32xf32>
    %2 = tpu.matmul %0, %1, %cst {dimension_numbers = #tpu.dot_dimension_numbers<[1], [0], [0], [1], [0, 0, 1, 1], [], []>} : vector<16x32xf32>, vector<32x32xf32>, vector<16x32xf32> -> vector<16x32xf32>
    %c0_3 = arith.constant 0 : index
    %c0_4 = arith.constant 0 : index
    %3 = vector.load %arg5[%c0_3, %c0_4] : memref<1x32xf32, #tpu.memory_space<vmem>>, vector<1x32xf32>
    %4 = vector.broadcast %3 : vector<1x32xf32> to vector<16x32xf32>
    %5 = arith.addf %2, %4 : vector<16x32xf32>
    %c0_5 = arith.constant 0 : index
    %c0_6 = arith.constant 0 : index
    %6 = vector.load %arg8[%c0_5, %c0_6] : memref<16x32xf32, #tpu.memory_space<vmem>>, vector<16x32xf32>
    tpu.vector_store %arg8[%c0_5, %c0_6], %5 {strides = array<i32>} : memref<16x32xf32, #tpu.memory_space<vmem>>, vector<16x32xf32>,
    %c0_7 = arith.constant 0 : index
    %c0_8 = arith.constant 0 : index
    %7 = vector.load %arg3[%c0_7, %c0_8] : memref<32x32xf32, #tpu.memory_space<vmem>>, vector<32x32xf32>
    %cst_9 = arith.constant dense<0.000000e+00> : vector<16x32xf32>
    %8 = tpu.matmul %0, %7, %cst_9 {dimension_numbers = #tpu.dot_dimension_numbers<[1], [0], [0], [1], [0, 0, 1, 1], [], []>} : vector<16x32xf32>, vector<32x32xf32>, vector<16x32xf32> -> vector<16x32xf32>
    %c0_10 = arith.constant 0 : index
    %c0_11 = arith.constant 0 : index
    %9 = vector.load %arg6[%c0_10, %c0_11] : memref<1x32xf32, #tpu.memory_space<vmem>>, vector<1x32xf32>
    %10 = vector.broadcast %9 : vector<1x32xf32> to vector<16x32xf32>
    %11 = arith.addf %8, %10 : vector<16x32xf32>
    %c0_12 = arith.constant 0 : index
    %c0_13 = arith.constant 0 : index
    %12 = vector.load %arg9[%c0_12, %c0_13] : memref<16x32xf32, #tpu.memory_space<vmem>>, vector<16x32xf32>
    tpu.vector_store %arg9[%c0_12, %c0_13], %11 {strides = array<i32>} : memref<16x32xf32, #tpu.memory_space<vmem>>, vector<16x32xf32>,
    %c0_14 = arith.constant 0 : index
    %c0_15 = arith.constant 0 : index
    %13 = vector.load %arg4[%c0_14, %c0_15] : memref<32x32xf32, #tpu.memory_space<vmem>>, vector<32x32xf32>
    %cst_16 = arith.constant dense<0.000000e+00> : vector<16x32xf32>
    %14 = tpu.matmul %0, %13, %cst_16 {dimension_numbers = #tpu.dot_dimension_numbers<[1], [0], [0], [1], [0, 0, 1, 1], [], []>} : vector<16x32xf32>, vector<32x32xf32>, vector<16x32xf32> -> vector<16x32xf32>
    %c0_17 = arith.constant 0 : index
    %c0_18 = arith.constant 0 : index
    %15 = vector.load %arg7[%c0_17, %c0_18] : memref<1x32xf32, #tpu.memory_space<vmem>>, vector<1x32xf32>
    %16 = vector.broadcast %15 : vector<1x32xf32> to vector<16x32xf32>
    %17 = arith.addf %14, %16 : vector<16x32xf32>
    %c0_19 = arith.constant 0 : index
    %c0_20 = arith.constant 0 : index
    %18 = vector.load %arg10[%c0_19, %c0_20] : memref<16x32xf32, #tpu.memory_space<vmem>>, vector<16x32xf32>
    tpu.vector_store %arg10[%c0_19, %c0_20], %17 {strides = array<i32>} : memref<16x32xf32, #tpu.memory_space<vmem>>, vector<16x32xf32>,
    return
  }
  func.func @transform_0(%arg0: i32) -> (i32, i32) {
    %c0_i32 = arith.constant 0 : i32
    %c0_i32_0 = arith.constant 0 : i32
    return %arg0, %c0_i32 : i32, i32
  }
  func.func @transform_1(%arg0: i32) -> (i32, i32) {
    %c0_i32 = arith.constant 0 : i32
    %c0_i32_0 = arith.constant 0 : i32
    %c0_i32_1 = arith.constant 0 : i32
    return %c0_i32, %c0_i32_0 : i32, i32
  }
  func.func @transform_2(%arg0: i32) -> (i32, i32) {
    %c0_i32 = arith.constant 0 : i32
    %c0_i32_0 = arith.constant 0 : i32
    %c0_i32_1 = arith.constant 0 : i32
    return %c0_i32, %c0_i32_0 : i32, i32
  }
  func.func @transform_3(%arg0: i32) -> (i32, i32) {
    %c0_i32 = arith.constant 0 : i32
    %c0_i32_0 = arith.constant 0 : i32
    %c0_i32_1 = arith.constant 0 : i32
    return %c0_i32, %c0_i32_0 : i32, i32
  }
  func.func @transform_4(%arg0: i32) -> (i32, i32) {
    %c0_i32 = arith.constant 0 : i32
    %c0_i32_0 = arith.constant 0 : i32
    %c0_i32_1 = arith.constant 0 : i32
    return %c0_i32, %c0_i32_0 : i32, i32
  }
  func.func @transform_5(%arg0: i32) -> (i32, i32) {
    %c0_i32 = arith.constant 0 : i32
    %c0_i32_0 = arith.constant 0 : i32
    %c0_i32_1 = arith.constant 0 : i32
    return %c0_i32, %c0_i32_0 : i32, i32
  }
  func.func @transform_6(%arg0: i32) -> (i32, i32) {
    %c0_i32 = arith.constant 0 : i32
    %c0_i32_0 = arith.constant 0 : i32
    %c0_i32_1 = arith.constant 0 : i32
    return %c0_i32, %c0_i32_0 : i32, i32
  }
  func.func @transform_7(%arg0: i32) -> (i32, i32) {
    %c0_i32 = arith.constant 0 : i32
    %c0_i32_0 = arith.constant 0 : i32
    return %arg0, %c0_i32 : i32, i32
  }
  func.func @transform_8(%arg0: i32) -> (i32, i32) {
    %c0_i32 = arith.constant 0 : i32
    %c0_i32_0 = arith.constant 0 : i32
    return %arg0, %c0_i32 : i32, i32
  }
  func.func @transform_9(%arg0: i32) -> (i32, i32) {
    %c0_i32 = arith.constant 0 : i32
    %c0_i32_0 = arith.constant 0 : i32
    return %arg0, %c0_i32 : i32, i32
  }
}

</mosaic_0001>

<llo_original>
// kernel: tpu_custom_call.1
$region0: #{tpu_custom_call.1}
  #allocation0 [shape = 'u32[]', space=smem, size = 0x4, offset = 0x4, fixed_abs, tag = 'smem constant byte address 0x4 - core index']
  #allocation1 [shape = 'u32[144,128]{1,0:T(1,128)}', space=vmem, size = 0x12000, scoped, tag = 'internal scratch']
  %s0 = inlined_call_operand.hbm [shape: f32[16,32], index: 0, kind: input, shape index: {}]
  %s1 = inlined_call_operand.hbm [shape: f32[32,32], index: 1, kind: input, shape index: {}]
  %s2 = inlined_call_operand.hbm [shape: f32[32,32], index: 2, kind: input, shape index: {}]
  %s3 = inlined_call_operand.hbm [shape: f32[32,32], index: 3, kind: input, shape index: {}]
  %s4 = inlined_call_operand.vmem [shape: f32[1,32], index: 4, kind: input, shape index: {}]
  %s5 = inlined_call_operand.vmem [shape: f32[1,32], index: 5, kind: input, shape index: {}]
  %s6 = inlined_call_operand.vmem [shape: f32[1,32], index: 6, kind: input, shape index: {}]
  %s7 = inlined_call_operand.hbm [shape: f32[16,32], index: 7, kind: output, shape index: {0}]
  %s8 = inlined_call_operand.hbm [shape: f32[16,32], index: 8, kind: output, shape index: {1}]
  %s9 = inlined_call_operand.hbm [shape: f32[16,32], index: 9, kind: output, shape index: {2}]
  %10 = xla_tuple %s7, %s8, %s9
  %s11 = sld [smem:[#allocation0]]
  $region70: #{tpu_custom_call.1} parent=0
    _
  %s13 = ssub.s32 1, %s11
  %s14 = scalar_select 0, %s13, %s11
  $region1: #{tpu_custom_call.1} parent=0
    #allocation2 [shape = 'u8[8192]{0}', space=vmem, size = 0x2000, scoped, tag = 'input window, operand 0, single buffered']
    #allocation3 [shape = 's32[1]{0}', space=sflag, size = 0x4, scoped, tag = 'scoped memory for tpu_custom_call.1']
    #allocation4 [shape = 's32[1]{0}', space=sflag, size = 0x4, scoped, tag = 'scoped memory for tpu_custom_call.1']
    #allocation5 [shape = 'u8[16384]{0}', space=vmem, size = 0x4000, scoped, tag = 'input window, operand 1, single buffered']
    #allocation6 [shape = 's32[1]{0}', space=sflag, size = 0x4, scoped, tag = 'scoped memory for tpu_custom_call.1']
    #allocation7 [shape = 'u8[16384]{0}', space=vmem, size = 0x4000, scoped, tag = 'input window, operand 2, single buffered']
    #allocation8 [shape = 'u8[16384]{0}', space=vmem, size = 0x4000, scoped, tag = 'input window, operand 3, single buffered']
    #allocation9 [shape = 's32[1]{0}', space=sflag, size = 0x4, scoped, tag = 'scoped memory for tpu_custom_call.1']
    #allocation10 [shape = 'u8[8192]{0}', space=vmem, size = 0x2000, scoped, tag = 'output window, operand 0, single buffered']
    #allocation11 [shape = 'u8[8192]{0}', space=vmem, size = 0x2000, scoped, tag = 'output window, operand 1, single buffered']
    #allocation12 [shape = 's32[1]{0}', space=sflag, size = 0x4, scoped, tag = 'scoped memory for tpu_custom_call.1']
    #allocation13 [shape = 'u8[8192]{0}', space=vmem, size = 0x2000, scoped, tag = 'output window, operand 2, single buffered']
    %15 = vsyncpa [#allocation3], 0
    %16 = vsyncpa [#allocation6], 0
    %17 = vsyncpa [#allocation9], 0
    %18 = vsyncpa [#allocation4], 0
    %19 = vsyncpa [#allocation12], 0
    // Predicated region
    $region2: #{tpu_custom_call.1} parent=1 // pred_check
      _
    $region3: #{tpu_custom_call.1} parent=1 // pred_check_branch
      %21 = sbr.rel (0) target = $region5
    $region4: #{tpu_custom_call.1} parent=1 // pred_region
      %s23 = ssub.s32 256, 256
      %24 = vsyncadd [#allocation3], %s23
      %s25 = sshll.u32 [#allocation2], 4
      %s26 = int_to_ptr.vmem [resolvable:$true] %s25
      %31 = dma.hbm_to_vmem [thread:$0]  %s0, 256, %s26, [#allocation3], 128, 128, 8
    $region5: #{tpu_custom_call.1} parent=1 // pred_fallthru
      _
    // Predicated region
    $region6: #{tpu_custom_call.1} parent=1 // pred_check
      _
    $region7: #{tpu_custom_call.1} parent=1 // pred_check_branch
      %33 = sbr.rel (0) target = $region9
    $region8: #{tpu_custom_call.1} parent=1 // pred_region
      %s35 = ssub.s32 512, 512
      %36 = vsyncadd [#allocation6], %s35
      %s37 = sshll.u32 [#allocation5], 4
      %s38 = int_to_ptr.vmem [resolvable:$true] %s37
      %43 = dma.hbm_to_vmem [thread:$0]  %s1, 512, %s38, [#allocation6], 128, 128, 8
    $region9: #{tpu_custom_call.1} parent=1 // pred_fallthru
      _
    // Predicated region
    $region10: #{tpu_custom_call.1} parent=1 // pred_check
      _
    $region11: #{tpu_custom_call.1} parent=1 // pred_check_branch
      %45 = sbr.rel (0) target = $region13
    $region12: #{tpu_custom_call.1} parent=1 // pred_region
      %s47 = ssub.s32 512, 512
      %48 = vsyncadd [#allocation6], %s47
      %s49 = sshll.u32 [#allocation7], 4
      %s50 = int_to_ptr.vmem [resolvable:$true] %s49
      %55 = dma.hbm_to_vmem [thread:$0]  %s2, 512, %s50, [#allocation6], 128, 128, 8
    $region13: #{tpu_custom_call.1} parent=1 // pred_fallthru
      _
    // Predicated region
    $region14: #{tpu_custom_call.1} parent=1 // pred_check
      _
    $region15: #{tpu_custom_call.1} parent=1 // pred_check_branch
      %57 = sbr.rel (0) target = $region17
    $region16: #{tpu_custom_call.1} parent=1 // pred_region
      %s59 = ssub.s32 512, 512
      %60 = vsyncadd [#allocation9], %s59
      %s61 = sshll.u32 [#allocation8], 4
      %s62 = int_to_ptr.vmem [resolvable:$true] %s61
      %67 = dma.hbm_to_vmem [thread:$0]  %s3, 512, %s62, [#allocation9], 128, 128, 8
    $region17: #{tpu_custom_call.1} parent=1 // pred_fallthru
      _
    // Predicated region
    $region18: #{tpu_custom_call.1} parent=1 // pred_check
      _
    $region19: #{tpu_custom_call.1} parent=1 // pred_check_branch
      %69 = sbr.rel (0) target = $region21
    $region20: #{tpu_custom_call.1} parent=1 // pred_region
      _
    $region21: #{tpu_custom_call.1} parent=1 // pred_fallthru
      _
    // Predicated region
    $region22: #{tpu_custom_call.1} parent=1 // pred_check
      _
    $region23: #{tpu_custom_call.1} parent=1 // pred_check_branch
      %71 = sbr.rel (0) target = $region25
    $region24: #{tpu_custom_call.1} parent=1 // pred_region
      _
    $region25: #{tpu_custom_call.1} parent=1 // pred_fallthru
      _
    // Predicated region
    $region26: #{tpu_custom_call.1} parent=1 // pred_check
      _
    $region27: #{tpu_custom_call.1} parent=1 // pred_check_branch
      %73 = sbr.rel (0) target = $region29
    $region28: #{tpu_custom_call.1} parent=1 // pred_region
      _
    $region29: #{tpu_custom_call.1} parent=1 // pred_fallthru
      _
    // Predicated region
    $region30: #{tpu_custom_call.1} parent=1 // pred_check
      _
    $region31: #{tpu_custom_call.1} parent=1 // pred_check_branch
      %75 = sbr.rel (0) target = $region33
    $region32: #{tpu_custom_call.1} parent=1 // pred_region
      %76 = dma.done [#allocation3], 256
    $region33: #{tpu_custom_call.1} parent=1 // pred_fallthru
      _
    // Predicated region
    $region34: #{tpu_custom_call.1} parent=1 // pred_check
      _
    $region35: #{tpu_custom_call.1} parent=1 // pred_check_branch
      %78 = sbr.rel (0) target = $region37
    $region36: #{tpu_custom_call.1} parent=1 // pred_region
      %79 = dma.done [#allocation6], 512
    $region37: #{tpu_custom_call.1} parent=1 // pred_fallthru
      _
    // Predicated region
    $region38: #{tpu_custom_call.1} parent=1 // pred_check
      _
    $region39: #{tpu_custom_call.1} parent=1 // pred_check_branch
      %81 = sbr.rel (0) target = $region41
    $region40: #{tpu_custom_call.1} parent=1 // pred_region
      %82 = dma.done [#allocation6], 512
    $region41: #{tpu_custom_call.1} parent=1 // pred_fallthru
      _
    // Predicated region
    $region42: #{tpu_custom_call.1} parent=1 // pred_check
      _
    $region43: #{tpu_custom_call.1} parent=1 // pred_check_branch
      %84 = sbr.rel (0) target = $region45
    $region44: #{tpu_custom_call.1} parent=1 // pred_region
      %85 = dma.done [#allocation9], 512
    $region45: #{tpu_custom_call.1} parent=1 // pred_fallthru
      _
    %v86 = vld [vmem:[#allocation2] sm:$0xff]
    %v87 = vld [vmem:[#allocation2 + $0x8] sm:$0xff]
    %v88 = vld [vmem:[#allocation5] sm:$0xff]
    %v89 = vld [vmem:[#allocation5 + $0x8] sm:$0xff]
    %v90 = vld [vmem:[#allocation5 + $0x10] sm:$0xff]
    %v91 = vld [vmem:[#allocation5 + $0x18] sm:$0xff]
    %v92 = vld [vmem:[%s4] sm:$0x1]
    %v94 = vlaneseq
    %v95 = vshrl.u32 %v94, 7
    %v96 = vsub.s32 0, %v95
    %v97 = vrot.slane %v92, %v96
    %vm99 = vcmask 261120
    %v101 = vsel %vm99, %v86, 0
    %v104 = vsel %vm99, %v87, 0
    %106 = vmatprep.subr.mxu0 0.0
    %107 = vmatpush1.msra.mxu0 0.0
    %108 = vmatprep.subr.mxu0 0.0
    %109 = vmatpush1.msra.mxu0 0.0
    %110 = vmatprep.subr.mxu0 0.0
    %111 = vmatpush1.msra.mxu0 0.0
    %112 = vmatprep.subr.mxu0 0.0
    %113 = vmatpush1.msra.mxu0 0.0
    %114 = vmatprep.subr.mxu0 0.0
    %115 = vmatpush1.msra.mxu0 0.0
    %116 = vmatprep.subr.mxu0 0.0
    %117 = vmatpush1.msra.mxu0 0.0
    %118 = vmatprep.subr.mxu0 0.0
    %119 = vmatpush1.msra.mxu0 0.0
    %120 = vmatprep.subr.mxu0 0.0
    %121 = vmatpush1.msra.mxu0 0.0
    %122 = vmatprep.subr.mxu0 0.0
    %123 = vmatpush1.msra.mxu0 0.0
    %124 = vmatprep.subr.mxu0 0.0
    %125 = vmatpush1.msra.mxu0 0.0
    %126 = vmatprep.subr.mxu0 0.0
    %127 = vmatpush1.msra.mxu0 0.0
    %128 = vmatprep.subr.mxu0 0.0
    %129 = vmatpush1.msra.mxu0 0.0
    %130 = vmatprep.subr.mxu0 0.0
    %131 = vmatpush1.msra.mxu0 %v91
    %132 = vmatprep.subr.mxu0 0.0
    %133 = vmatpush1.msra.mxu0 %v90
    %134 = vmatprep.subr.mxu0 0.0
    %135 = vmatpush1.msra.mxu0 %v89
    %136 = vmatprep.subr.mxu0 0.0
    %137 = vmatpush1.msra.mxu0 %v88
    %138 = vmatprep.subr.mxu0 0.0
    %139 = vmatpush2.msra.mxu0 0.0
    %140 = vmatprep.subr.mxu0 0.0
    %141 = vmatpush2.msra.mxu0 0.0
    %142 = vmatprep.subr.mxu0 0.0
    %143 = vmatpush2.msra.mxu0 0.0
    %144 = vmatprep.subr.mxu0 0.0
    %145 = vmatpush2.msra.mxu0 0.0
    %146 = vmatprep.subr.mxu0 0.0
    %147 = vmatpush2.msra.mxu0 0.0
    %148 = vmatprep.subr.mxu0 0.0
    %149 = vmatpush2.msra.mxu0 0.0
    %150 = vmatprep.subr.mxu0 0.0
    %151 = vmatpush2.msra.mxu0 0.0
    %152 = vmatprep.subr.mxu0 0.0
    %153 = vmatpush2.msra.mxu0 0.0
    %154 = vmatprep.subr.mxu0 0.0
    %155 = vmatpush2.msra.mxu0 0.0
    %156 = vmatprep.subr.mxu0 0.0
    %157 = vmatpush2.msra.mxu0 0.0
    %158 = vmatprep.subr.mxu0 0.0
    %159 = vmatpush2.msra.mxu0 0.0
    %160 = vmatprep.subr.mxu0 0.0
    %161 = vmatpush2.msra.mxu0 0.0
    %162 = vmatprep.subr.mxu0 0.0
    %163 = vmatpush2.msra.mxu0 0.0
    %164 = vmatprep.subr.mxu0 0.0
    %165 = vmatpush2.msra.mxu0 0.0
    %166 = vmatprep.subr.mxu0 0.0
    %167 = vmatpush2.msra.mxu0 0.0
    %168 = vmatprep.subr.mxu0 0.0
    %169 = vmatpush2.msra.mxu0 0.0
    %170 = vmatprep.mubr.f32.mxu0 0.0
    %171 = vmatmul.mubr.f32.gmra.mxu0 %v101
    %v172 = vpop.f32.mrf.mxu0
    %v173 = vadd.f32 %v97, %v172
    %v174 = vpop.f32.mrf.mxu0
    %175 = vmatprep.mubr.f32.mxu0 0.0
    %176 = vmatmul.mubr.f32.gmra.mxu0 %v104
    %v177 = vpop.f32.mrf.mxu0
    %v178 = vadd.f32 %v97, %v177
    %v179 = vpop.f32.mrf.mxu0
    %180 = vdwg.mxu0
    %181 = vst.msk [vmem:[#allocation10] sm:$0xff] %vm99, %v173
    %182 = vst.msk [vmem:[#allocation10 + $0x8] sm:$0xff] %vm99, %v178
    %v183 = vld [vmem:[#allocation7] sm:$0xff]
    %v184 = vld [vmem:[#allocation7 + $0x8] sm:$0xff]
    %v185 = vld [vmem:[#allocation7 + $0x10] sm:$0xff]
    %v186 = vld [vmem:[#allocation7 + $0x18] sm:$0xff]
    %v187 = vld [vmem:[%s5] sm:$0x1]
    %v189 = vlaneseq
    %v190 = vshrl.u32 %v189, 7
    %v191 = vsub.s32 0, %v190
    %v192 = vrot.slane %v187, %v191
    %194 = vmatprep.subr.mxu0 0.0
    %195 = vmatpush1.msra.mxu0 0.0
    %196 = vmatprep.subr.mxu0 0.0
    %197 = vmatpush1.msra.mxu0 0.0
    %198 = vmatprep.subr.mxu0 0.0
    %199 = vmatpush1.msra.mxu0 0.0
    %200 = vmatprep.subr.mxu0 0.0
    %201 = vmatpush1.msra.mxu0 0.0
    %202 = vmatprep.subr.mxu0 0.0
    %203 = vmatpush1.msra.mxu0 0.0
    %204 = vmatprep.subr.mxu0 0.0
    %205 = vmatpush1.msra.mxu0 0.0
    %206 = vmatprep.subr.mxu0 0.0
    %207 = vmatpush1.msra.mxu0 0.0
    %208 = vmatprep.subr.mxu0 0.0
    %209 = vmatpush1.msra.mxu0 0.0
    %210 = vmatprep.subr.mxu0 0.0
    %211 = vmatpush1.msra.mxu0 0.0
    %212 = vmatprep.subr.mxu0 0.0
    %213 = vmatpush1.msra.mxu0 0.0
    %214 = vmatprep.subr.mxu0 0.0
    %215 = vmatpush1.msra.mxu0 0.0
    %216 = vmatprep.subr.mxu0 0.0
    %217 = vmatpush1.msra.mxu0 0.0
    %218 = vmatprep.subr.mxu0 0.0
    %219 = vmatpush1.msra.mxu0 %v186
    %220 = vmatprep.subr.mxu0 0.0
    %221 = vmatpush1.msra.mxu0 %v185
    %222 = vmatprep.subr.mxu0 0.0
    %223 = vmatpush1.msra.mxu0 %v184
    %224 = vmatprep.subr.mxu0 0.0
    %225 = vmatpush1.msra.mxu0 %v183
    %226 = vmatprep.subr.mxu0 0.0
    %227 = vmatpush2.msra.mxu0 0.0
    %228 = vmatprep.subr.mxu0 0.0
    %229 = vmatpush2.msra.mxu0 0.0
    %230 = vmatprep.subr.mxu0 0.0
    %231 = vmatpush2.msra.mxu0 0.0
    %232 = vmatprep.subr.mxu0 0.0
    %233 = vmatpush2.msra.mxu0 0.0
    %234 = vmatprep.subr.mxu0 0.0
    %235 = vmatpush2.msra.mxu0 0.0
    %236 = vmatprep.subr.mxu0 0.0
    %237 = vmatpush2.msra.mxu0 0.0
    %238 = vmatprep.subr.mxu0 0.0
    %239 = vmatpush2.msra.mxu0 0.0
    %240 = vmatprep.subr.mxu0 0.0
    %241 = vmatpush2.msra.mxu0 0.0
    %242 = vmatprep.subr.mxu0 0.0
    %243 = vmatpush2.msra.mxu0 0.0
    %244 = vmatprep.subr.mxu0 0.0
    %245 = vmatpush2.msra.mxu0 0.0
    %246 = vmatprep.subr.mxu0 0.0
    %247 = vmatpush2.msra.mxu0 0.0
    %248 = vmatprep.subr.mxu0 0.0
    %249 = vmatpush2.msra.mxu0 0.0
    %250 = vmatprep.subr.mxu0 0.0
    %251 = vmatpush2.msra.mxu0 0.0
    %252 = vmatprep.subr.mxu0 0.0
    %253 = vmatpush2.msra.mxu0 0.0
    %254 = vmatprep.subr.mxu0 0.0
    %255 = vmatpush2.msra.mxu0 0.0
    %256 = vmatprep.subr.mxu0 0.0
    %257 = vmatpush2.msra.mxu0 0.0
    %258 = vmatprep.mubr.f32.mxu0 0.0
    %259 = vmatmul.mubr.f32.gmra.mxu0 %v101
    %v260 = vpop.f32.mrf.mxu0
    %v261 = vadd.f32 %v192, %v260
    %v262 = vpop.f32.mrf.mxu0
    %263 = vmatprep.mubr.f32.mxu0 0.0
    %264 = vmatmul.mubr.f32.gmra.mxu0 %v104
    %v265 = vpop.f32.mrf.mxu0
    %v266 = vadd.f32 %v192, %v265
    %v267 = vpop.f32.mrf.mxu0
    %268 = vdwg.mxu0
    %269 = vst.msk [vmem:[#allocation11] sm:$0xff] %vm99, %v261
    %270 = vst.msk [vmem:[#allocation11 + $0x8] sm:$0xff] %vm99, %v266
    %v271 = vld [vmem:[#allocation8] sm:$0xff]
    %v272 = vld [vmem:[#allocation8 + $0x8] sm:$0xff]
    %v273 = vld [vmem:[#allocation8 + $0x10] sm:$0xff]
    %v274 = vld [vmem:[#allocation8 + $0x18] sm:$0xff]
    %v275 = vld [vmem:[%s6] sm:$0x1]
    %v277 = vlaneseq
    %v278 = vshrl.u32 %v277, 7
    %v279 = vsub.s32 0, %v278
    %v280 = vrot.slane %v275, %v279
    %282 = vmatprep.subr.mxu0 0.0
    %283 = vmatpush1.msra.mxu0 0.0
    %284 = vmatprep.subr.mxu0 0.0
    %285 = vmatpush1.msra.mxu0 0.0
    %286 = vmatprep.subr.mxu0 0.0
    %287 = vmatpush1.msra.mxu0 0.0
    %288 = vmatprep.subr.mxu0 0.0
    %289 = vmatpush1.msra.mxu0 0.0
    %290 = vmatprep.subr.mxu0 0.0
    %291 = vmatpush1.msra.mxu0 0.0
    %292 = vmatprep.subr.mxu0 0.0
    %293 = vmatpush1.msra.mxu0 0.0
    %294 = vmatprep.subr.mxu0 0.0
    %295 = vmatpush1.msra.mxu0 0.0
    %296 = vmatprep.subr.mxu0 0.0
    %297 = vmatpush1.msra.mxu0 0.0
    %298 = vmatprep.subr.mxu0 0.0
    %299 = vmatpush1.msra.mxu0 0.0
    %300 = vmatprep.subr.mxu0 0.0
    %301 = vmatpush1.msra.mxu0 0.0
    %302 = vmatprep.subr.mxu0 0.0
    %303 = vmatpush1.msra.mxu0 0.0
    %304 = vmatprep.subr.mxu0 0.0
    %305 = vmatpush1.msra.mxu0 0.0
    %306 = vmatprep.subr.mxu0 0.0
    %307 = vmatpush1.msra.mxu0 %v274
    %308 = vmatprep.subr.mxu0 0.0
    %309 = vmatpush1.msra.mxu0 %v273
    %310 = vmatprep.subr.mxu0 0.0
    %311 = vmatpush1.msra.mxu0 %v272
    %312 = vmatprep.subr.mxu0 0.0
    %313 = vmatpush1.msra.mxu0 %v271
    %314 = vmatprep.subr.mxu0 0.0
    %315 = vmatpush2.msra.mxu0 0.0
    %316 = vmatprep.subr.mxu0 0.0
    %317 = vmatpush2.msra.mxu0 0.0
    %318 = vmatprep.subr.mxu0 0.0
    %319 = vmatpush2.msra.mxu0 0.0
    %320 = vmatprep.subr.mxu0 0.0
    %321 = vmatpush2.msra.mxu0 0.0
    %322 = vmatprep.subr.mxu0 0.0
    %323 = vmatpush2.msra.mxu0 0.0
    %324 = vmatprep.subr.mxu0 0.0
    %325 = vmatpush2.msra.mxu0 0.0
    %326 = vmatprep.subr.mxu0 0.0
    %327 = vmatpush2.msra.mxu0 0.0
    %328 = vmatprep.subr.mxu0 0.0
    %329 = vmatpush2.msra.mxu0 0.0
    %330 = vmatprep.subr.mxu0 0.0
    %331 = vmatpush2.msra.mxu0 0.0
    %332 = vmatprep.subr.mxu0 0.0
    %333 = vmatpush2.msra.mxu0 0.0
    %334 = vmatprep.subr.mxu0 0.0
    %335 = vmatpush2.msra.mxu0 0.0
    %336 = vmatprep.subr.mxu0 0.0
    %337 = vmatpush2.msra.mxu0 0.0
    %338 = vmatprep.subr.mxu0 0.0
    %339 = vmatpush2.msra.mxu0 0.0
    %340 = vmatprep.subr.mxu0 0.0
    %341 = vmatpush2.msra.mxu0 0.0
    %342 = vmatprep.subr.mxu0 0.0
    %343 = vmatpush2.msra.mxu0 0.0
    %344 = vmatprep.subr.mxu0 0.0
    %345 = vmatpush2.msra.mxu0 0.0
    %346 = vmatprep.mubr.f32.mxu0 0.0
    %347 = vmatmul.mubr.f32.gmra.mxu0 %v101
    %v348 = vpop.f32.mrf.mxu0
    %v349 = vadd.f32 %v280, %v348
    %v350 = vpop.f32.mrf.mxu0
    %351 = vmatprep.mubr.f32.mxu0 0.0
    %352 = vmatmul.mubr.f32.gmra.mxu0 %v104
    %v353 = vpop.f32.mrf.mxu0
    %v354 = vadd.f32 %v280, %v353
    %v355 = vpop.f32.mrf.mxu0
    %356 = vdwg.mxu0
    %357 = vst.msk [vmem:[#allocation13] sm:$0xff] %vm99, %v349
    %358 = vst.msk [vmem:[#allocation13 + $0x8] sm:$0xff] %vm99, %v354
    // Predicated region
    $region46: #{tpu_custom_call.1} parent=1 // pred_check
      _
    $region47: #{tpu_custom_call.1} parent=1 // pred_check_branch
      %360 = sbr.rel (0) target = $region49
    $region48: #{tpu_custom_call.1} parent=1 // pred_region
      %s362 = ssub.s32 256, 256
      %363 = vsyncadd [#allocation4], %s362
      %s364 = sshll.u32 [#allocation10], 4
      %s365 = int_to_ptr.vmem [resolvable:$true] %s364
      %370 = dma.vmem_to_hbm [thread:$0]  %s365, 256, %s7, [#allocation4], 128, 128, 8
    $region49: #{tpu_custom_call.1} parent=1 // pred_fallthru
      _
    // Predicated region
    $region50: #{tpu_custom_call.1} parent=1 // pred_check
      _
    $region51: #{tpu_custom_call.1} parent=1 // pred_check_branch
      %372 = sbr.rel (0) target = $region53
    $region52: #{tpu_custom_call.1} parent=1 // pred_region
      %s374 = ssub.s32 256, 256
      %375 = vsyncadd [#allocation12], %s374
      %s376 = sshll.u32 [#allocation11], 4
      %s377 = int_to_ptr.vmem [resolvable:$true] %s376
      %382 = dma.vmem_to_hbm [thread:$0]  %s377, 256, %s8, [#allocation12], 128, 128, 8
    $region53: #{tpu_custom_call.1} parent=1 // pred_fallthru
      _
    // Predicated region
    $region54: #{tpu_custom_call.1} parent=1 // pred_check
      _
    $region55: #{tpu_custom_call.1} parent=1 // pred_check_branch
      %384 = sbr.rel (0) target = $region57
    $region56: #{tpu_custom_call.1} parent=1 // pred_region
      %s386 = ssub.s32 256, 256
      %387 = vsyncadd [#allocation12], %s386
      %s388 = sshll.u32 [#allocation13], 4
      %s389 = int_to_ptr.vmem [resolvable:$true] %s388
      %394 = dma.vmem_to_hbm [thread:$0]  %s389, 256, %s9, [#allocation12], 128, 128, 8
    $region57: #{tpu_custom_call.1} parent=1 // pred_fallthru
      _
    // Predicated region
    $region58: #{tpu_custom_call.1} parent=1 // pred_check
      _
    $region59: #{tpu_custom_call.1} parent=1 // pred_check_branch
      %396 = sbr.rel (0) target = $region61
    $region60: #{tpu_custom_call.1} parent=1 // pred_region
      %397 = dma.done [#allocation4], 256
    $region61: #{tpu_custom_call.1} parent=1 // pred_fallthru
      _
    // Predicated region
    $region62: #{tpu_custom_call.1} parent=1 // pred_check
      _
    $region63: #{tpu_custom_call.1} parent=1 // pred_check_branch
      %399 = sbr.rel (0) target = $region65
    $region64: #{tpu_custom_call.1} parent=1 // pred_region
      %400 = dma.done [#allocation12], 256
    $region65: #{tpu_custom_call.1} parent=1 // pred_fallthru
      _
    // Predicated region
    $region66: #{tpu_custom_call.1} parent=1 // pred_check
      _
    $region67: #{tpu_custom_call.1} parent=1 // pred_check_branch
      %402 = sbr.rel (0) target = $region69
    $region68: #{tpu_custom_call.1} parent=1 // pred_region
      %403 = dma.done [#allocation12], 256
    $region69: #{tpu_custom_call.1} parent=1 // pred_fallthru
      _
    %404 = vsyncpa [#allocation3], 1
    %405 = vsyncpa [#allocation6], 1
    %406 = vsyncpa [#allocation9], 1
    %407 = vsyncpa [#allocation4], 1
    %408 = vsyncpa [#allocation12], 1

</llo_original>
